<compile_context>
chip_gen: v5e
topology: v5e:2x2
jax: 0.10.0
libtpu: 0.0.40
codegen_flags: <defaults>
</compile_context>

<pallas_src>
import jax
import jax.numpy as jnp
from jax.experimental import pallas as pl
from jax.experimental.pallas import tpu as pltpu


# ----------------------------- kernel bodies ------------------------------ #

def _sae_encode_kernel(x_ref, we_ref, be_ref, hid_ref):
    # hidden = sigmoid(x @ W_enc + b_enc); grid = (batch tiles, hidden tiles)
    h = jnp.dot(x_ref[...], we_ref[...], preferred_element_type=jnp.float32)
    hid_ref[...] = jax.nn.sigmoid(h + be_ref[...]).astype(hid_ref.dtype)


def _sae_decode_kernel(x_ref, we_ref, be_ref, wd_ref, bd_ref, out_ref, acc_ref):
    # out = sigmoid(x @ W_enc + b_enc) @ W_dec + b_dec
    # grid axis 1 is a K-reduction over hidden-dim tiles.
    k = pl.program_id(1)

    @pl.when(k == 0)
    def _():
        acc_ref[...] = jnp.zeros_like(acc_ref)

    h = jnp.dot(x_ref[...], we_ref[...], preferred_element_type=jnp.float32)
    h = jax.nn.sigmoid(h + be_ref[...])                       # f32 elementwise
    acc_ref[...] += jnp.dot(h.astype(wd_ref.dtype), wd_ref[...],
                            preferred_element_type=jnp.float32)

    @pl.when(k == pl.num_programs(1) - 1)
    def _():
        out_ref[...] = (acc_ref[...] + bd_ref[...]).astype(out_ref.dtype)


def _sae_fused_kernel(x_ref, we_ref, be_ref, wd_ref, bd_ref,
                      out_ref, hid_ref, acc_ref):
    # Same as decode kernel but also writes the hidden representation.
    k = pl.program_id(1)

    @pl.when(k == 0)
    def _():
        acc_ref[...] = jnp.zeros_like(acc_ref)

    h = jnp.dot(x_ref[...], we_ref[...], preferred_element_type=jnp.float32)
    h = jax.nn.sigmoid(h + be_ref[...])
    hid_ref[...] = h.astype(hid_ref.dtype)
    acc_ref[...] += jnp.dot(h.astype(wd_ref.dtype), wd_ref[...],
                            preferred_element_type=jnp.float32)

    @pl.when(k == pl.num_programs(1) - 1)
    def _():
        out_ref[...] = (acc_ref[...] + bd_ref[...]).astype(out_ref.dtype)


# ------------------------------- wrapper ----------------------------------- #

def _pad_up(n, m):
    return ((n + m - 1) // m) * m


def _pad2(a, rows, cols):
    r, c = a.shape
    if r == rows and c == cols:
        return a
    return jnp.pad(a, ((0, rows - r), (0, cols - c)))


def autoencoder_forward(x, w_enc, b_enc, w_dec, b_dec, rep=False, *,
                        tb=256, thid=512, compute_dtype=jnp.bfloat16):
    """AutoEncoder forward.

    x: (B, inputDim); w_enc: (inputDim, hiddenDim) [pre-transposed vs PyTorch];
    w_dec: (hiddenDim, inputDim); biases 1-D.
    rep=False -> reconstruction, rep=True -> hidden, rep="both" -> (out, hidden)
    """
    assert tb % 8 == 0 and thid % 128 == 0
    B, D_in = x.shape
    D_hid = w_enc.shape[1]
    out_dtype = x.dtype

    # Lane-dense padded problem sizes and effective tile sizes.
    d_in_p = _pad_up(D_in, 128)
    d_hid_p = _pad_up(D_hid, 128)
    thid_e = min(thid, d_hid_p)
    d_hid_p = _pad_up(d_hid_p, thid_e)
    tb_e = min(tb, _pad_up(B, 8))
    b_p = _pad_up(B, tb_e)
    n_b, n_k = b_p // tb_e, d_hid_p // thid_e

    # Padded, dtype-converted operands (zero padding keeps the math exact).
    x_p = _pad2(x, b_p, d_in_p).astype(compute_dtype)
    we_p = _pad2(w_enc, d_in_p, d_hid_p).astype(compute_dtype)
    wd_p = _pad2(w_dec, d_hid_p, d_in_p).astype(compute_dtype)
    be_p = _pad2(b_enc.reshape(1, D_hid).astype(jnp.float32), 1, d_hid_p)
    bd_p = _pad2(b_dec.reshape(1, D_in).astype(jnp.float32), 1, d_in_p)

    csz = jnp.dtype(compute_dtype).itemsize
    osz = jnp.dtype(out_dtype).itemsize

    # VMEM budget (double-buffered pipelined operands + f32 accumulator).
    vmem_need = 2 * (tb_e * d_in_p * csz          # x tile
                     + d_in_p * thid_e * csz      # W_enc tile
                     + thid_e * d_in_p * csz      # W_dec tile
                     + (thid_e + d_in_p) * 4      # biases
                     + tb_e * d_in_p * osz        # out tile
                     + tb_e * thid_e * osz)       # hidden tile (fused path)
    vmem_need += tb_e * d_in_p * 4                # accumulator scratch
    vmem_limit = min(max(2 * vmem_need, 32 * 1024 * 1024), 48 * 1024 * 1024)

    enc_flops = 2 * b_p * d_in_p * d_hid_p
    dec_flops = 2 * b_p * d_hid_p * d_in_p
    x_bytes = b_p * d_in_p * csz
    we_bytes = d_in_p * d_hid_p * csz
    wd_bytes = d_hid_p * d_in_p * csz
    b_bytes = (d_hid_p + d_in_p) * 4
    out_bytes = b_p * d_in_p * osz
    hid_bytes = b_p * d_hid_p * osz

    x_spec = pl.BlockSpec((tb_e, d_in_p), lambda i, k: (i, 0))
    we_spec = pl.BlockSpec((d_in_p, thid_e), lambda i, k: (0, k))
    be_spec = pl.BlockSpec((1, thid_e), lambda i, k: (0, k))
    wd_spec = pl.BlockSpec((thid_e, d_in_p), lambda i, k: (k, 0))
    bd_spec = pl.BlockSpec((1, d_in_p), lambda i, k: (0, 0))
    out_spec = pl.BlockSpec((tb_e, d_in_p), lambda i, k: (i, 0))
    hid_spec = pl.BlockSpec((tb_e, thid_e), lambda i, k: (i, k))

    if rep is True:
        hid = pl.pallas_call(
            _sae_encode_kernel,
            out_shape=jax.ShapeDtypeStruct((b_p, d_hid_p), out_dtype),
            grid_spec=pltpu.PrefetchScalarGridSpec(
                num_scalar_prefetch=0,
                grid=(n_b, n_k),
                in_specs=[x_spec, we_spec, be_spec],
                out_specs=hid_spec,
            ),
            compiler_params=pltpu.CompilerParams(
                dimension_semantics=("parallel", "parallel"),
                vmem_limit_bytes=vmem_limit),
            cost_estimate=pl.CostEstimate(
                flops=enc_flops,
                transcendentals=b_p * d_hid_p,
                bytes_accessed=x_bytes + we_bytes + b_bytes + hid_bytes),
        )(x_p, we_p, be_p)
        return hid[:B, :D_hid]

    if rep is False:
        out = pl.pallas_call(
            _sae_decode_kernel,
            out_shape=jax.ShapeDtypeStruct((b_p, d_in_p), out_dtype),
            grid_spec=pltpu.PrefetchScalarGridSpec(
                num_scalar_prefetch=0,
                grid=(n_b, n_k),
                in_specs=[x_spec, we_spec, be_spec, wd_spec, bd_spec],
                out_specs=out_spec,
                scratch_shapes=[pltpu.VMEM((tb_e, d_in_p), jnp.float32)],
            ),
            compiler_params=pltpu.CompilerParams(
                dimension_semantics=("parallel", "arbitrary"),
                vmem_limit_bytes=vmem_limit),
            cost_estimate=pl.CostEstimate(
                flops=enc_flops + dec_flops,
                transcendentals=b_p * d_hid_p,
                bytes_accessed=(x_bytes + we_bytes + wd_bytes + b_bytes
                                + out_bytes)),
        )(x_p, we_p, be_p, wd_p, bd_p)
        return out[:B, :D_in]

    # rep == "both": fused dual-output call (no recomputed encoder matmul).
    out, hid = pl.pallas_call(
        _sae_fused_kernel,
        out_shape=(jax.ShapeDtypeStruct((b_p, d_in_p), out_dtype),
                   jax.ShapeDtypeStruct((b_p, d_hid_p), out_dtype)),
        grid_spec=pltpu.PrefetchScalarGridSpec(
            num_scalar_prefetch=0,
            grid=(n_b, n_k),
            in_specs=[x_spec, we_spec, be_spec, wd_spec, bd_spec],
            out_specs=[out_spec, hid_spec],
            scratch_shapes=[pltpu.VMEM((tb_e, d_in_p), jnp.float32)],
        ),
        compiler_params=pltpu.CompilerParams(
            dimension_semantics=("parallel", "arbitrary"),
            vmem_limit_bytes=vmem_limit),
        cost_estimate=pl.CostEstimate(
            flops=enc_flops + dec_flops,
            transcendentals=b_p * d_hid_p,
            bytes_accessed=(x_bytes + we_bytes + wd_bytes + b_bytes
                            + out_bytes + hid_bytes)),
    )(x_p, we_p, be_p, wd_p, bd_p)
    return out[:B, :D_in], hid[:B, :D_hid]


# ----------------------------- init & reference ---------------------------- #

def init_params(key, input_dim, hidden_dim, dtype=jnp.float32):
    """Deterministic init matching nn.Linear shapes (uniform +-1/sqrt(fan_in))."""
    k1, k2, k3, k4 = jax.random.split(key, 4)
    lim_e = 1.0 / (input_dim ** 0.5)
    lim_d = 1.0 / (hidden_dim ** 0.5)
    # stored transposed vs PyTorch: (in, out)
    w_enc = jax.random.uniform(k1, (input_dim, hidden_dim), dtype, -lim_e, lim_e)
    b_enc = jax.random.uniform(k2, (hidden_dim,), dtype, -lim_e, lim_e)
    w_dec = jax.random.uniform(k3, (hidden_dim, input_dim), dtype, -lim_d, lim_d)
    b_dec = jax.random.uniform(k4, (input_dim,), dtype, -lim_d, lim_d)
    return w_enc, b_enc, w_dec, b_dec


def reference_forward(x, w_enc, b_enc, w_dec, b_dec, rep=False,
                      compute_dtype=jnp.bfloat16):
    """Pure-JAX reference mimicking the kernel's bf16-operand / f32-accum math."""
    q = lambda a: a.astype(compute_dtype).astype(jnp.float32)
    h = jax.nn.sigmoid(q(x) @ q(w_enc) + b_enc.astype(jnp.float32))
    if rep:
        return h
    return q(h) @ q(w_dec) + b_dec.astype(jnp.float32)


# --------------------------------- demo ------------------------------------ #

if __name__ == "__main__":
    key = jax.random.PRNGKey(0)
    kx, kp = jax.random.split(key)

    # Small shapes, deliberately not multiples of 128/tile so the padding path
    # and the multi-step (batch x hidden-reduction) grid are both exercised.
    batch, input_dim, hidden_dim = 24, 64, 200
    x = jax.random.normal(kx, (batch, input_dim), jnp.float32)
    w_enc, b_enc, w_dec, b_dec = init_params(kp, input_dim, hidden_dim)

    kw = dict(tb=16, thid=128, compute_dtype=jnp.bfloat16)
    out = autoencoder_forward(x, w_enc, b_enc, w_dec, b_dec, rep=False, **kw)
    hid = autoencoder_forward(x, w_enc, b_enc, w_dec, b_dec, rep=True, **kw)
    out2, hid2 = autoencoder_forward(x, w_enc, b_enc, w_dec, b_dec,
                                     rep="both", **kw)
    jax.block_until_ready((out, hid, out2, hid2))

    ref_out = reference_forward(x, w_enc, b_enc, w_dec, b_dec, rep=False)
    ref_hid = reference_forward(x, w_enc, b_enc, w_dec, b_dec, rep=True)

    assert out.shape == (batch, input_dim)
    assert hid.shape == (batch, hidden_dim)
    assert out2.shape == (batch, input_dim)
    assert hid2.shape == (batch, hidden_dim)
    assert jnp.allclose(out, ref_out, atol=5e-3, rtol=5e-3)
    assert jnp.allclose(hid, ref_hid, atol=5e-3, rtol=5e-3)
    assert jnp.allclose(out2, ref_out, atol=5e-3, rtol=5e-3)
    assert jnp.allclose(hid2, ref_hid, atol=5e-3, rtol=5e-3)

    print("KERNEL_OK")
</pallas_src>

<mosaic_0001>
module attributes {stable_mosaic.version = 11 : i64} {
  func.func @_sae_decode_kernel(%arg0: i32, %arg1: i32, %arg2: memref<16x128xbf16, #tpu.memory_space<vmem>>, %arg3: memref<128x128xbf16, #tpu.memory_space<vmem>>, %arg4: memref<1x128xf32, #tpu.memory_space<vmem>>, %arg5: memref<128x128xbf16, #tpu.memory_space<vmem>>, %arg6: memref<1x128xf32, #tpu.memory_space<vmem>>, %arg7: memref<16x128xf32, #tpu.memory_space<vmem>>, %arg8: memref<16x128xf32, #tpu.memory_space<vmem>>) attributes {dimension_semantics = [#tpu.dimension_semantics<parallel>, #tpu.dimension_semantics<arbitrary>], iteration_bounds = array<i64: 2, 2>, scalar_prefetch = 0 : i64, scratch_operands = 1 : i64, tpu.core_type = #tpu.core_type<tc>, window_params = [{transform_indices = @transform_0, window_bounds = array<i64: 16, 128>}, {transform_indices = @transform_1, window_bounds = array<i64: 128, 128>}, {transform_indices = @transform_2, window_bounds = array<i64: 1, 128>}, {transform_indices = @transform_3, window_bounds = array<i64: 128, 128>}, {pipeline_mode = #tpu.pipeline_mode<synchronous>, transform_indices = @transform_4, window_bounds = array<i64: 1, 128>}, {transform_indices = @transform_5, window_bounds = array<i64: 16, 128>}]} {
    %c0_i32 = arith.constant 0 : i32
    %0 = arith.cmpi eq, %arg1, %c0_i32 : i32
    %1 = arith.extui %0 : i1 to i32
    %c0_i32_0 = arith.constant 0 : i32
    %2 = arith.cmpi ne, %1, %c0_i32_0 : i32
    scf.if %2 {
      %cst_15 = arith.constant 0.000000e+00 : f32
      %23 = vector.broadcast %cst_15 : f32 to vector<16x128xf32>
      %c0_16 = arith.constant 0 : index
      %c0_17 = arith.constant 0 : index
      %24 = vector.load %arg8[%c0_16, %c0_17] : memref<16x128xf32, #tpu.memory_space<vmem>>, vector<16x128xf32>
      tpu.vector_store %arg8[%c0_16, %c0_17], %23 {strides = array<i32>} : memref<16x128xf32, #tpu.memory_space<vmem>>, vector<16x128xf32>,
    } else {
    }
    %c0 = arith.constant 0 : index
    %c0_1 = arith.constant 0 : index
    %3 = vector.load %arg2[%c0, %c0_1] : memref<16x128xbf16, #tpu.memory_space<vmem>>, vector<16x128xbf16>
    %c0_2 = arith.constant 0 : index
    %c0_3 = arith.constant 0 : index
    %4 = vector.load %arg3[%c0_2, %c0_3] : memref<128x128xbf16, #tpu.memory_space<vmem>>, vector<128x128xbf16>
    %cst = arith.constant dense<0.000000e+00> : vector<16x128xf32>
    %5 = tpu.matmul %3, %4, %cst {dimension_numbers = #tpu.dot_dimension_numbers<[1], [0], [0], [1], [0, 0, 1, 1], [], []>} : vector<16x128xbf16>, vector<128x128xbf16>, vector<16x128xf32> -> vector<16x128xf32>
    %c0_4 = arith.constant 0 : index
    %c0_5 = arith.constant 0 : index
    %6 = vector.load %arg4[%c0_4, %c0_5] : memref<1x128xf32, #tpu.memory_space<vmem>>, vector<1x128xf32>
    %7 = vector.broadcast %6 : vector<1x128xf32> to vector<16x128xf32>
    %8 = arith.addf %5, %7 : vector<16x128xf32>
    %9 = arith.negf %8 : vector<16x128xf32>
    %10 = math.exp %9 : vector<16x128xf32>
    %cst_6 = arith.constant 1.000000e+00 : f32
    %11 = vector.broadcast %cst_6 : f32 to vector<16x128xf32>
    %12 = arith.addf %11, %10 : vector<16x128xf32>
    %13 = arith.divf %11, %12 : vector<16x128xf32>
    %c0_7 = arith.constant 0 : index
    %c0_8 = arith.constant 0 : index
    %14 = vector.load %arg8[%c0_7, %c0_8] : memref<16x128xf32, #tpu.memory_space<vmem>>, vector<16x128xf32>
    %15 = arith.truncf %13 : vector<16x128xf32> to vector<16x128xbf16>
    %c0_9 = arith.constant 0 : index
    %c0_10 = arith.constant 0 : index
    %16 = vector.load %arg5[%c0_9, %c0_10] : memref<128x128xbf16, #tpu.memory_space<vmem>>, vector<128x128xbf16>
    %cst_11 = arith.constant dense<0.000000e+00> : vector<16x128xf32>
    %17 = tpu.matmul %15, %16, %cst_11 {dimension_numbers = #tpu.dot_dimension_numbers<[1], [0], [0], [1], [0, 0, 1, 1], [], []>} : vector<16x128xbf16>, vector<128x128xbf16>, vector<16x128xf32> -> vector<16x128xf32>
    %18 = arith.addf %14, %17 : vector<16x128xf32>
    %c0_12 = arith.constant 0 : index
    %c0_13 = arith.constant 0 : index
    %19 = vector.load %arg8[%c0_12, %c0_13] : memref<16x128xf32, #tpu.memory_space<vmem>>, vector<16x128xf32>
    tpu.vector_store %arg8[%c0_12, %c0_13], %18 {strides = array<i32>} : memref<16x128xf32, #tpu.memory_space<vmem>>, vector<16x128xf32>,
    %c1_i32 = arith.constant 1 : i32
    %20 = arith.cmpi eq, %arg1, %c1_i32 : i32
    %21 = arith.extui %20 : i1 to i32
    %c0_i32_14 = arith.constant 0 : i32
    %22 = arith.cmpi ne, %21, %c0_i32_14 : i32
    scf.if %22 {
      %c0_15 = arith.constant 0 : index
      %c0_16 = arith.constant 0 : index
      %23 = vector.load %arg8[%c0_15, %c0_16] : memref<16x128xf32, #tpu.memory_space<vmem>>, vector<16x128xf32>
      %c0_17 = arith.constant 0 : index
      %c0_18 = arith.constant 0 : index
      %24 = vector.load %arg6[%c0_17, %c0_18] : memref<1x128xf32, #tpu.memory_space<vmem>>, vector<1x128xf32>
      %25 = vector.broadcast %24 : vector<1x128xf32> to vector<16x128xf32>
      %26 = arith.addf %23, %25 : vector<16x128xf32>
      %c0_19 = arith.constant 0 : index
      %c0_20 = arith.constant 0 : index
      %27 = vector.load %arg7[%c0_19, %c0_20] : memref<16x128xf32, #tpu.memory_space<vmem>>, vector<16x128xf32>
      tpu.vector_store %arg7[%c0_19, %c0_20], %26 {strides = array<i32>} : memref<16x128xf32, #tpu.memory_space<vmem>>, vector<16x128xf32>,
    } else {
    }
    return
  }
  func.func @transform_0(%arg0: i32, %arg1: i32) -> (i32, i32) {
    %c0_i32 = arith.constant 0 : i32
    %c0_i32_0 = arith.constant 0 : i32
    return %arg0, %c0_i32 : i32, i32
  }
  func.func @transform_1(%arg0: i32, %arg1: i32) -> (i32, i32) {
    %c0_i32 = arith.constant 0 : i32
    %c0_i32_0 = arith.constant 0 : i32
    return %c0_i32, %arg1 : i32, i32
  }
  func.func @transform_2(%arg0: i32, %arg1: i32) -> (i32, i32) {
    %c0_i32 = arith.constant 0 : i32
    %c0_i32_0 = arith.constant 0 : i32
    return %c0_i32, %arg1 : i32, i32
  }
  func.func @transform_3(%arg0: i32, %arg1: i32) -> (i32, i32) {
    %c0_i32 = arith.constant 0 : i32
    %c0_i32_0 = arith.constant 0 : i32
    return %arg1, %c0_i32 : i32, i32
  }
  func.func @transform_4(%arg0: i32, %arg1: i32) -> (i32, i32) {
    %c0_i32 = arith.constant 0 : i32
    %c0_i32_0 = arith.constant 0 : i32
    %c0_i32_1 = arith.constant 0 : i32
    return %c0_i32, %c0_i32_0 : i32, i32
  }
  func.func @transform_5(%arg0: i32, %arg1: i32) -> (i32, i32) {
    %c0_i32 = arith.constant 0 : i32
    %c0_i32_0 = arith.constant 0 : i32
    return %arg0, %c0_i32 : i32, i32
  }
}

</mosaic_0001>

<llo_original>
// kernel: tpu_custom_call.1
$region0: #{tpu_custom_call.1}
  #allocation0 [shape = 'u32[]', space=smem, size = 0x4, offset = 0x4, fixed_abs, tag = 'smem constant byte address 0x4 - core index']
  #allocation1 [shape = 'u32[72,128]{1,0:T(1,128)}', space=vmem, size = 0x9000, scoped, tag = 'internal scratch']
  #allocation2 [shape = 'f32[16,128]{1,0:T(8,128)}', space=vmem, size = 0x2000, scoped, tag = 'scratch operand']
  %s0 = inlined_call_operand.hbm [shape: bf16[32,128], index: 0, kind: input, shape index: {}]
  %s1 = inlined_call_operand.hbm [shape: bf16[128,256], index: 1, kind: input, shape index: {}]
  %s2 = inlined_call_operand.hbm [shape: f32[1,256], index: 2, kind: input, shape index: {}]
  %s3 = inlined_call_operand.hbm [shape: bf16[256,128], index: 3, kind: input, shape index: {}]
  %s4 = inlined_call_operand.vmem [shape: f32[1,128], index: 4, kind: input, shape index: {}]
  %s5 = inlined_call_operand.hbm [shape: f32[32,128], index: 5, kind: output, shape index: {}]
  %s6 = sld [smem:[#allocation0]]
  $region77: #{tpu_custom_call.1} parent=0
    _
  %s8 = ssub.s32 1, %s6
  %s9 = scalar_select 0, %s8, %s6
  $region1: #{tpu_custom_call.1} parent=0
    #allocation3 [shape = 'u8[8192]{0}', space=vmem, size = 0x2000, scoped, tag = 'input window, operand 0']
    #allocation4 [shape = 's32[2]{0}', space=sflag, size = 0x8, scoped, tag = 'scoped memory for tpu_custom_call.1']
    #allocation5 [shape = 's32[2]{0}', space=sflag, size = 0x8, scoped, tag = 'scoped memory for tpu_custom_call.1']
    #allocation6 [shape = 'u8[65536]{0}', space=vmem, size = 0x10000, scoped, tag = 'input window, operand 1']
    #allocation7 [shape = 's32[2]{0}', space=sflag, size = 0x8, scoped, tag = 'scoped memory for tpu_custom_call.1']
    #allocation8 [shape = 'u8[1024]{0}', space=vmem, size = 0x400, scoped, tag = 'input window, operand 2']
    #allocation9 [shape = 'u8[65536]{0}', space=vmem, size = 0x10000, scoped, tag = 'input window, operand 3']
    #allocation10 [shape = 's32[2]{0}', space=sflag, size = 0x8, scoped, tag = 'scoped memory for tpu_custom_call.1']
    #allocation11 [shape = 'u8[16384]{0}', space=vmem, size = 0x4000, scoped, tag = 'output window, operand 0']
    %10 = vsyncpa [#allocation4], 0
    %s11 = scalar_lea.sflag [#allocation4], 1
    %12 = vsyncpa %s11, 0
    %13 = vsyncpa [#allocation7], 0
    %s14 = scalar_lea.sflag [#allocation7], 1
    %15 = vsyncpa %s14, 0
    %16 = vsyncpa [#allocation10], 0
    %s17 = scalar_lea.sflag [#allocation10], 1
    %18 = vsyncpa %s17, 0
    %19 = vsyncpa [#allocation5], 0
    %s20 = scalar_lea.sflag [#allocation5], 1
    %21 = vsyncpa %s20, 0
    loop: start=0, step=1, limit=6
    $region2: #{tpu_custom_call.1} parent=1 // loop_pre_header
      _
    $region3: #{tpu_custom_call.1} parent=1 // loop_header
      %s23 = sphi 0, %s27
      %p24 = scmp.ge.s32.totalorder %s23, 6
      %s30 = sphi 0, %s42
      %s31 = sphi 0, %s38
      %s32 = sphi 0, %s30
      %s33 = sphi 0, %s31
      %s34 = sphi 0, %s32
      %s35 = sphi 0, %s33
      %s45 = sphi 0, %s47
      %s48 = sphi 0, %s45
      %s49 = sphi 0, %s48
      %s65 = sphi 0, %s49
      %s71 = sphi 0, %s73
      %s74 = sphi 0, %s71
      %s75 = sphi 0, %s74
      %s91 = sphi 0, %s75
      %s97 = sphi 0, %s99
      %s100 = sphi 0, %s97
      %s101 = sphi 0, %s100
      %s117 = sphi 0, %s101
      %s123 = sphi 0, %s125
      %s126 = sphi 0, %s123
      %s127 = sphi 0, %s126
      %s143 = sphi 0, %s127
      %s147 = sphi 0, %s147
      %s149 = sphi 0, %s147
      %s150 = sphi 0, %s149
      %s164 = sphi 0, %s150
      %s170 = sphi 0, %s172
      %s173 = sphi 0, %s170
      %s174 = sphi 0, %s173
      %s190 = sphi 0, %s174
    $region4: #{tpu_custom_call.1} parent=1 // loop_header_branch
      %26 = sbr.rel (%p24) target = $region8
    $region5: #{tpu_custom_call.1} parent=1 // loop_body
      %s28 = ssub.s32 %s23, 1
      %s29 = ssub.s32 %s23, 2
      %s36 = sadd.s32 1, %s31
      %p37 = scmp.ge.s32.totalorder %s36, 2
      %s38 = scalar_select %p37, 0, %s36
      %s39 = sadd.s32 1, %s30
      %s40 = scalar_select %p37, %s39, %s30
      %p41 = scmp.ge.s32.totalorder %s40, 2
      %s42 = scalar_select %p41, 0, %s40
      %s43 = ssub.s32 %s30, %s42
      %p44 = scmp.eq.s32.totalorder %s43, 0
      %s46 = sadd.s32 %s45, 1
      %s47 = scalar_select %p44, %s45, %s46
      %p50 = pneg %p44
      %p51 = scmp.eq.s32.totalorder %s23, 3
      %p52 = por %p50, %p51
      %p53 = scmp.ne.s32.totalorder %s45, %s48
      %p54 = scmp.eq.s32.totalorder %s23, 0
      %p55 = por %p53, %p54
      %p56 = scmp.ne.s32.totalorder %s45, %s48
      %p57 = scmp.eq.s32.totalorder %s28, 3
      %p58 = por %p56, %p57
      %p59 = scmp.ne.s32.totalorder %s48, %s49
      %p60 = scmp.eq.s32.totalorder %s28, 0
      %p61 = por %p59, %p60
      %p62 = scmp.ne.s32.totalorder %s48, %s49
      %p63 = scmp.eq.s32.totalorder %s29, 3
      %p64 = por %p62, %p63
      %p66 = scmp.ne.s32.totalorder %s49, %s65
      %p67 = scmp.eq.s32.totalorder %s29, 0
      %p68 = por %p66, %p67
      %s69 = ssub.s32 %s31, %s38
      %p70 = scmp.eq.s32.totalorder %s69, 0
      %s72 = sadd.s32 %s71, 1
      %s73 = scalar_select %p70, %s71, %s72
      %p76 = pneg %p70
      %p77 = scmp.eq.s32.totalorder %s23, 3
      %p78 = por %p76, %p77
      %p79 = scmp.ne.s32.totalorder %s71, %s74
      %p80 = scmp.eq.s32.totalorder %s23, 0
      %p81 = por %p79, %p80
      %p82 = scmp.ne.s32.totalorder %s71, %s74
      %p83 = scmp.eq.s32.totalorder %s28, 3
      %p84 = por %p82, %p83
      %p85 = scmp.ne.s32.totalorder %s74, %s75
      %p86 = scmp.eq.s32.totalorder %s28, 0
      %p87 = por %p85, %p86
      %p88 = scmp.ne.s32.totalorder %s74, %s75
      %p89 = scmp.eq.s32.totalorder %s29, 3
      %p90 = por %p88, %p89
      %p92 = scmp.ne.s32.totalorder %s75, %s91
      %p93 = scmp.eq.s32.totalorder %s29, 0
      %p94 = por %p92, %p93
      %s95 = ssub.s32 %s31, %s38
      %p96 = scmp.eq.s32.totalorder %s95, 0
      %s98 = sadd.s32 %s97, 1
      %s99 = scalar_select %p96, %s97, %s98
      %p102 = pneg %p96
      %p103 = scmp.eq.s32.totalorder %s23, 3
      %p104 = por %p102, %p103
      %p105 = scmp.ne.s32.totalorder %s97, %s100
      %p106 = scmp.eq.s32.totalorder %s23, 0
      %p107 = por %p105, %p106
      %p108 = scmp.ne.s32.totalorder %s97, %s100
      %p109 = scmp.eq.s32.totalorder %s28, 3
      %p110 = por %p108, %p109
      %p111 = scmp.ne.s32.totalorder %s100, %s101
      %p112 = scmp.eq.s32.totalorder %s28, 0
      %p113 = por %p111, %p112
      %p114 = scmp.ne.s32.totalorder %s100, %s101
      %p115 = scmp.eq.s32.totalorder %s29, 3
      %p116 = por %p114, %p115
      %p118 = scmp.ne.s32.totalorder %s101, %s117
      %p119 = scmp.eq.s32.totalorder %s29, 0
      %p120 = por %p118, %p119
      %s121 = ssub.s32 %s31, %s38
      %p122 = scmp.eq.s32.totalorder %s121, 0
      %s124 = sadd.s32 %s123, 1
      %s125 = scalar_select %p122, %s123, %s124
      %p128 = pneg %p122
      %p129 = scmp.eq.s32.totalorder %s23, 3
      %p130 = por %p128, %p129
      %p131 = scmp.ne.s32.totalorder %s123, %s126
      %p132 = scmp.eq.s32.totalorder %s23, 0
      %p133 = por %p131, %p132
      %p134 = scmp.ne.s32.totalorder %s123, %s126
      %p135 = scmp.eq.s32.totalorder %s28, 3
      %p136 = por %p134, %p135
      %p137 = scmp.ne.s32.totalorder %s126, %s127
      %p138 = scmp.eq.s32.totalorder %s28, 0
      %p139 = por %p137, %p138
      %p140 = scmp.ne.s32.totalorder %s126, %s127
      %p141 = scmp.eq.s32.totalorder %s29, 3
      %p142 = por %p140, %p141
      %p144 = scmp.ne.s32.totalorder %s127, %s143
      %p145 = scmp.eq.s32.totalorder %s29, 0
      %p146 = por %p144, %p145
      %s148 = sadd.s32 %s147, 1
      %p151 = scmp.eq.s32.totalorder %s23, 3
      %p152 = scmp.ne.s32.totalorder %s147, %s149
      %p153 = scmp.eq.s32.totalorder %s23, 0
      %p154 = por %p152, %p153
      %p155 = scmp.ne.s32.totalorder %s147, %s149
      %p156 = scmp.eq.s32.totalorder %s28, 3
      %p157 = por %p155, %p156
      %p158 = scmp.ne.s32.totalorder %s149, %s150
      %p159 = scmp.eq.s32.totalorder %s28, 0
      %p160 = por %p158, %p159
      %p161 = scmp.ne.s32.totalorder %s149, %s150
      %p162 = scmp.eq.s32.totalorder %s29, 3
      %p163 = por %p161, %p162
      %p165 = scmp.ne.s32.totalorder %s150, %s164
      %p166 = scmp.eq.s32.totalorder %s29, 0
      %p167 = por %p165, %p166
      %s168 = ssub.s32 %s30, %s42
      %p169 = scmp.eq.s32.totalorder %s168, 0
      %s171 = sadd.s32 %s170, 1
      %s172 = scalar_select %p169, %s170, %s171
      %p175 = pneg %p169
      %p176 = scmp.eq.s32.totalorder %s23, 3
      %p177 = por %p175, %p176
      %p178 = scmp.ne.s32.totalorder %s170, %s173
      %p179 = scmp.eq.s32.totalorder %s23, 0
      %p180 = por %p178, %p179
      %p181 = scmp.ne.s32.totalorder %s170, %s173
      %p182 = scmp.eq.s32.totalorder %s28, 3
      %p183 = por %p181, %p182
      %p184 = scmp.ne.s32.totalorder %s173, %s174
      %p185 = scmp.eq.s32.totalorder %s28, 0
      %p186 = por %p184, %p185
      %p187 = scmp.ne.s32.totalorder %s173, %s174
      %p188 = scmp.eq.s32.totalorder %s29, 3
      %p189 = por %p187, %p188
      %p191 = scmp.ne.s32.totalorder %s174, %s190
      %p192 = scmp.eq.s32.totalorder %s29, 0
      %p193 = por %p191, %p192
      %p194 = scmp.le.s32.totalorder 1, %s23
      %p195 = scmp.lt.s32.totalorder %s23, 5
      %p196 = pnand %p194, %p195
      %p197 = pneg %p196
      // Predicated region
      $region9: #{tpu_custom_call.1} parent=5 // pred_check
        _
      $region10: #{tpu_custom_call.1} parent=5 // pred_check_branch
        %199 = sbr.rel (%p196) target = $region12
      $region11: #{tpu_custom_call.1} parent=5 // pred_region
        %s200 = ssub.s32 %s23, 1
        // Predicated region
        $region13: #{tpu_custom_call.1} parent=11 // pred_check
          %p201 = pneg %p160
        $region14: #{tpu_custom_call.1} parent=11 // pred_check_branch
          %203 = sbr.rel (%p201) target = $region16
        $region15: #{tpu_custom_call.1} parent=11 // pred_region
          _
        $region16: #{tpu_custom_call.1} parent=11 // pred_fallthru
          _
      $region12: #{tpu_custom_call.1} parent=5 // pred_fallthru
        _
      %p204 = scmp.lt.s32.totalorder %s23, 4
      // Predicated region
      $region17: #{tpu_custom_call.1} parent=5 // pred_check
        %p205 = pneg %p204
      $region18: #{tpu_custom_call.1} parent=5 // pred_check_branch
        %207 = sbr.rel (%p205) target = $region20
      $region19: #{tpu_custom_call.1} parent=5 // pred_region
        // Predicated region
        $region21: #{tpu_custom_call.1} parent=19 // pred_check
          %p208 = pneg %p55
        $region22: #{tpu_custom_call.1} parent=19 // pred_check_branch
          %210 = sbr.rel (%p208) target = $region24
        $region23: #{tpu_custom_call.1} parent=19 // pred_region
          %s211 = sand.u32 %s45, 1
          %s212 = scalar_lea.sflag [#allocation4], %s211
          %s213 = sand.u32 %s45, 1
          %s214 = smul.addr %s213, 8
          %s215 = scalar_lea.vmem [#allocation3], %s214
          %s216 = smul.u32 2, %s30
          %218 = vsyncadd %s212, 0
          %s219 = smul.addr %s216, 4
          %s220 = scalar_lea.hbm %s0, %s219
          %s221 = sshll.u32 %s220, 4
          %s222 = int_to_ptr.hbm [resolvable:$true] %s221
          %s223 = sshll.u32 %s215, 4
          %s224 = int_to_ptr.vmem [resolvable:$true] %s223
          %229 = dma.hbm_to_vmem [thread:$0]  %s222, 128, %s224, %s212, 64, 64, 4
        $region24: #{tpu_custom_call.1} parent=19 // pred_fallthru
          _
        // Predicated region
        $region25: #{tpu_custom_call.1} parent=19 // pred_check
          %p230 = pneg %p81
        $region26: #{tpu_custom_call.1} parent=19 // pred_check_branch
          %232 = sbr.rel (%p230) target = $region28
        $region27: #{tpu_custom_call.1} parent=19 // pred_region
          %s233 = sand.u32 %s23, 1
          %s234 = scalar_lea.sflag [#allocation7], %s233
          %s235 = sand.u32 %s71, 1
          %s236 = smul.addr %s235, 64
          %s237 = scalar_lea.vmem [#allocation6], %s236
          %239 = vsyncadd %s234, 0
          %s240 = smul.addr %s31, 4
          %s241 = scalar_lea.hbm %s1, %s240
          %s242 = sshll.u32 %s241, 4
          %s243 = int_to_ptr.hbm [resolvable:$true] %s242
          %s244 = sshll.u32 %s237, 4
          %s245 = int_to_ptr.vmem [resolvable:$true] %s244
          %250 = dma.hbm_to_vmem [thread:$0]  %s243, 1024, %s245, %s234, 128, 64, 4
        $region28: #{tpu_custom_call.1} parent=19 // pred_fallthru
          _
        // Predicated region
        $region29: #{tpu_custom_call.1} parent=19 // pred_check
          %p251 = pneg %p107
        $region30: #{tpu_custom_call.1} parent=19 // pred_check_branch
          %253 = sbr.rel (%p251) target = $region32
        $region31: #{tpu_custom_call.1} parent=19 // pred_region
          %s254 = sand.u32 %s23, 1
          %s255 = scalar_lea.sflag [#allocation7], %s254
          %s256 = sand.u32 %s97, 1
          %s257 = scalar_lea.vmem [#allocation8], %s256
          %259 = vsyncadd %s255, 0
          %s260 = scalar_lea.hbm %s2, %s31
          %s262 = sshll.u32 %s260, 4
          %s263 = int_to_ptr.hbm [resolvable:$true] %s262
          %s264 = sshll.u32 %s257, 4
          %s265 = int_to_ptr.vmem [resolvable:$true] %s264
          %267 = dma.hbm_to_vmem [thread:$0]  %s263, 16, %s265, %s255
        $region32: #{tpu_custom_call.1} parent=19 // pred_fallthru
          _
        // Predicated region
        $region33: #{tpu_custom_call.1} parent=19 // pred_check
          %p268 = pneg %p133
        $region34: #{tpu_custom_call.1} parent=19 // pred_check_branch
          %270 = sbr.rel (%p268) target = $region36
        $region35: #{tpu_custom_call.1} parent=19 // pred_region
          %s271 = sand.u32 %s123, 1
          %s272 = scalar_lea.sflag [#allocation10], %s271
          %s273 = sand.u32 %s123, 1
          %s274 = smul.addr %s273, 64
          %s275 = scalar_lea.vmem [#allocation9], %s274
          %s276 = smul.u32 16, %s31
          %278 = vsyncadd %s272, 0
          %s279 = smul.addr %s276, 4
          %s280 = scalar_lea.hbm %s3, %s279
          %s281 = sshll.u32 %s280, 4
          %s282 = int_to_ptr.hbm [resolvable:$true] %s281
          %s283 = sshll.u32 %s275, 4
          %s284 = int_to_ptr.vmem [resolvable:$true] %s283
          %289 = dma.hbm_to_vmem [thread:$0]  %s282, 1024, %s284, %s272, 64, 64, 4
        $region36: #{tpu_custom_call.1} parent=19 // pred_fallthru
          _
      $region20: #{tpu_custom_call.1} parent=5 // pred_fallthru
        _
      %p290 = scmp.le.s32.totalorder 1, %s23
      %p291 = scmp.lt.s32.totalorder %s23, 5
      %p292 = pnand %p290, %p291
      %p293 = pneg %p292
      // Predicated region
      $region37: #{tpu_custom_call.1} parent=5 // pred_check
        _
      $region38: #{tpu_custom_call.1} parent=5 // pred_check_branch
        %295 = sbr.rel (%p292) target = $region40
      $region39: #{tpu_custom_call.1} parent=5 // pred_region
        %s296 = ssub.s32 %s23, 1
        %s297 = sand.u32 %s48, 1
        %s298 = scalar_lea.sflag [#allocation4], %s297
        %s299 = sand.u32 %s48, 1
        %s300 = smul.addr %s299, 8
        %s301 = scalar_lea.vmem [#allocation3], %s300
        // Predicated region
        $region41: #{tpu_custom_call.1} parent=39 // pred_check
          %p302 = pneg %p61
        $region42: #{tpu_custom_call.1} parent=39 // pred_check_branch
          %304 = sbr.rel (%p302) target = $region44
        $region43: #{tpu_custom_call.1} parent=39 // pred_region
          %306 = dma.done %s298, 128
        $region44: #{tpu_custom_call.1} parent=39 // pred_fallthru
          _
        %s307 = sand.u32 %s28, 1
        %s308 = scalar_lea.sflag [#allocation7], %s307
        %s309 = sand.u32 %s74, 1
        %s310 = smul.addr %s309, 64
        %s311 = scalar_lea.vmem [#allocation6], %s310
        // Predicated region
        $region45: #{tpu_custom_call.1} parent=39 // pred_check
          %p312 = pneg %p87
        $region46: #{tpu_custom_call.1} parent=39 // pred_check_branch
          %314 = sbr.rel (%p312) target = $region48
        $region47: #{tpu_custom_call.1} parent=39 // pred_region
          %316 = dma.done %s308, 1024
        $region48: #{tpu_custom_call.1} parent=39 // pred_fallthru
          _
        %s317 = sand.u32 %s28, 1
        %s318 = scalar_lea.sflag [#allocation7], %s317
        %s319 = sand.u32 %s100, 1
        %s320 = scalar_lea.vmem [#allocation8], %s319
        // Predicated region
        $region49: #{tpu_custom_call.1} parent=39 // pred_check
          %p321 = pneg %p113
        $region50: #{tpu_custom_call.1} parent=39 // pred_check_branch
          %323 = sbr.rel (%p321) target = $region52
        $region51: #{tpu_custom_call.1} parent=39 // pred_region
          %325 = dma.done %s318, 16
        $region52: #{tpu_custom_call.1} parent=39 // pred_fallthru
          _
        %s326 = sand.u32 %s126, 1
        %s327 = scalar_lea.sflag [#allocation10], %s326
        %s328 = sand.u32 %s126, 1
        %s329 = smul.addr %s328, 64
        %s330 = scalar_lea.vmem [#allocation9], %s329
        // Predicated region
        $region53: #{tpu_custom_call.1} parent=39 // pred_check
          %p331 = pneg %p139
        $region54: #{tpu_custom_call.1} parent=39 // pred_check_branch
          %333 = sbr.rel (%p331) target = $region56
        $region55: #{tpu_custom_call.1} parent=39 // pred_region
          %335 = dma.done %s327, 1024
        $region56: #{tpu_custom_call.1} parent=39 // pred_fallthru
          _
        %s336 = sand.u32 %s48, 1
        %s337 = scalar_lea.sflag [#allocation4], %s336
        %s338 = sand.u32 %s48, 1
        %s339 = smul.addr %s338, 8
        %s340 = scalar_lea.vmem [#allocation3], %s339
        %p341 = pneg %p61
        %p342 = pneg %p58
        %s343 = sand.u32 %s28, 1
        %s344 = scalar_lea.sflag [#allocation7], %s343
        %s345 = sand.u32 %s74, 1
        %s346 = smul.addr %s345, 64
        %s347 = scalar_lea.vmem [#allocation6], %s346
        %p348 = pneg %p87
        %p349 = pneg %p84
        %s350 = sand.u32 %s28, 1
        %s351 = scalar_lea.sflag [#allocation7], %s350
        %s352 = sand.u32 %s100, 1
        %s353 = scalar_lea.vmem [#allocation8], %s352
        %p354 = pneg %p113
        %p355 = pneg %p110
        %s356 = sand.u32 %s126, 1
        %s357 = scalar_lea.sflag [#allocation10], %s356
        %s358 = sand.u32 %s126, 1
        %s359 = smul.addr %s358, 64
        %s360 = scalar_lea.vmem [#allocation9], %s359
        %p361 = pneg %p139
        %p362 = pneg %p136
        %p363 = pneg %p160
        %p364 = pneg %p157
        %p365 = pneg %p186
        %p366 = pneg %p183
        %s367 = sand.u32 %s173, 1
        %s368 = scalar_lea.sflag [#allocation5], %s367
        %s369 = sand.u32 %s173, 1
        %s370 = smul.addr %s369, 16
        %s371 = scalar_lea.vmem [#allocation11], %s370
        %s372 = smul.u32 2, %s32
        %s373 = smul.u32 16, %s33
        %s374 = smul.u32 2, %s32
        %p375 = scmp.eq.s32.totalorder %s33, 0
        // Predicated region
        $region57: #{tpu_custom_call.1} parent=39 // pred_check
          %p376 = pneg %p375
        $region58: #{tpu_custom_call.1} parent=39 // pred_check_branch
          %378 = sbr.rel (%p376) target = $region60
        $region59: #{tpu_custom_call.1} parent=39 // pred_region
          %379 = vst [vmem:[#allocation2] sm:$0xff] 0.0
          %380 = vst [vmem:[#allocation2 + $0x8] sm:$0xff] 0.0
        $region60: #{tpu_custom_call.1} parent=39 // pred_fallthru
          _
        %v381 = vld [vmem:[%s301] sm:$0xf]
        %v382 = vld [vmem:[%s301 + $0x4] sm:$0xf]
        %v383 = vld [vmem:[%s311] sm:$0xf]
        %v384 = vld [vmem:[%s311 + $0x4] sm:$0xf]
        %v385 = vld [vmem:[%s311 + $0x8] sm:$0xf]
        %v386 = vld [vmem:[%s311 + $0xc] sm:$0xf]
        %v387 = vld [vmem:[%s311 + $0x10] sm:$0xf]
        %v388 = vld [vmem:[%s311 + $0x14] sm:$0xf]
        %v389 = vld [vmem:[%s311 + $0x18] sm:$0xf]
        %v390 = vld [vmem:[%s311 + $0x1c] sm:$0xf]
        %v391 = vld [vmem:[%s311 + $0x20] sm:$0xf]
        %v392 = vld [vmem:[%s311 + $0x24] sm:$0xf]
        %v393 = vld [vmem:[%s311 + $0x28] sm:$0xf]
        %v394 = vld [vmem:[%s311 + $0x2c] sm:$0xf]
        %v395 = vld [vmem:[%s311 + $0x30] sm:$0xf]
        %v396 = vld [vmem:[%s311 + $0x34] sm:$0xf]
        %v397 = vld [vmem:[%s311 + $0x38] sm:$0xf]
        %v398 = vld [vmem:[%s311 + $0x3c] sm:$0xf]
        %v399 = vld [vmem:[%s320] sm:$0x1]
        %v401 = vperm.slane %v399, 0
        %v405 = vunpack.c.l.b16 %v381
        %v406 = vunpack.c.l.b16 %v382
        %v407 = vpack.c.b16 %v406, %v405
        %v425 = vunpack.c.l.b16 %v383
        %v426 = vunpack.c.l.b16 %v384
        %v427 = vunpack.c.l.b16 %v385
        %v428 = vunpack.c.l.b16 %v386
        %v429 = vunpack.c.l.b16 %v387
        %v430 = vunpack.c.l.b16 %v388
        %v431 = vunpack.c.l.b16 %v389
        %v432 = vunpack.c.l.b16 %v390
        %v433 = vunpack.c.l.b16 %v391
        %v434 = vunpack.c.l.b16 %v392
        %v435 = vunpack.c.l.b16 %v393
        %v436 = vunpack.c.l.b16 %v394
        %v437 = vunpack.c.l.b16 %v395
        %v438 = vunpack.c.l.b16 %v396
        %v439 = vunpack.c.l.b16 %v397
        %v440 = vunpack.c.l.b16 %v398
        %v441 = vpack.c.b16 %v426, %v425
        %v442 = vpack.c.b16 %v428, %v427
        %v443 = vpack.c.b16 %v430, %v429
        %v444 = vpack.c.b16 %v432, %v431
        %v445 = vpack.c.b16 %v434, %v433
        %v446 = vpack.c.b16 %v436, %v435
        %v447 = vpack.c.b16 %v438, %v437
        %v448 = vpack.c.b16 %v440, %v439
        %457 = vmatpush.bf16.msra.mxu0 %v448
        %458 = vmatpush.bf16.msra.mxu0 %v447
        %459 = vmatpush.bf16.msra.mxu0 %v446
        %460 = vmatpush.bf16.msra.mxu0 %v445
        %461 = vmatpush.bf16.msra.mxu0 %v444
        %462 = vmatpush.bf16.msra.mxu0 %v443
        %463 = vmatpush.bf16.msra.mxu0 %v442
        %464 = vmatpush.bf16.msra.mxu0 %v441
        %465 = vmatmul.bf16.gmra.mxu0 %v407
        %v466 = vpop.f32.mrf.mxu0
        %v467 = vadd.f32 %v401, %v466
        %v468 = vpop.f32.mrf.mxu0
        %v469 = vadd.f32 %v401, %v468
        %470 = vdwg.mxu0
        %v471 = vxor.u32 %v467, 2147483648
        %v472 = vxor.u32 %v469, 2147483648
        %v473 = vmul.f32 %v471, 1.442695
        %v474 = vpow.pop %v473
        %v475 = vmul.f32 %v472, 1.442695
        %v476 = vpow.pop %v475
        %v477 = vadd.f32 %v474, 1.0
        %v478 = vadd.f32 %v476, 1.0
        %v479 = vrcp.pop %v477
        %v480 = vmul.f32 %v477, %v479
        %v481 = vsub.f32 1.0, %v480
        %v482 = vmul.f32 %v479, %v481
        %v483 = vadd.f32 %v479, %v482
        %vm484 = vweird.f32 %v477
        %vm485 = vweird.f32 %v479
        %vm486 = vmor %vm484, %vm485
        %v487 = vsel %vm486, %v479, %v483
        %v488 = vand.u32 2147483647, %v477
        %vm489 = vcmp.eq.f32.partialorder %v488, 8.507059e+37
        %v490 = vand.u32 %v477, 2147483648
        %v491 = vor.u32 1.1754944e-38, %v490
        %v492 = vsel %vm489, %v491, %v487
        %v493 = vmul.f32 1.0, %v492
        %v494 = vrcp.pop %v478
        %v495 = vmul.f32 %v478, %v494
        %v496 = vsub.f32 1.0, %v495
        %v497 = vmul.f32 %v494, %v496
        %v498 = vadd.f32 %v494, %v497
        %vm499 = vweird.f32 %v478
        %vm500 = vweird.f32 %v494
        %vm501 = vmor %vm499, %vm500
        %v502 = vsel %vm501, %v494, %v498
        %v503 = vand.u32 2147483647, %v478
        %vm504 = vcmp.eq.f32.partialorder %v503, 8.507059e+37
        %v505 = vand.u32 %v478, 2147483648
        %v506 = vor.u32 1.1754944e-38, %v505
        %v507 = vsel %vm504, %v506, %v502
        %v508 = vmul.f32 1.0, %v507
        %v509 = vld [vmem:[#allocation2] sm:$0xff]
        %v510 = vld [vmem:[#allocation2 + $0x8] sm:$0xff]
        %v511 = vpack.c.bf16 %v508, %v493
        %v512 = vld [vmem:[%s330] sm:$0xf]
        %v513 = vld [vmem:[%s330 + $0x4] sm:$0xf]
        %v514 = vld [vmem:[%s330 + $0x8] sm:$0xf]
        %v515 = vld [vmem:[%s330 + $0xc] sm:$0xf]
        %v516 = vld [vmem:[%s330 + $0x10] sm:$0xf]
        %v517 = vld [vmem:[%s330 + $0x14] sm:$0xf]
        %v518 = vld [vmem:[%s330 + $0x18] sm:$0xf]
        %v519 = vld [vmem:[%s330 + $0x1c] sm:$0xf]
        %v520 = vld [vmem:[%s330 + $0x20] sm:$0xf]
        %v521 = vld [vmem:[%s330 + $0x24] sm:$0xf]
        %v522 = vld [vmem:[%s330 + $0x28] sm:$0xf]
        %v523 = vld [vmem:[%s330 + $0x2c] sm:$0xf]
        %v524 = vld [vmem:[%s330 + $0x30] sm:$0xf]
        %v525 = vld [vmem:[%s330 + $0x34] sm:$0xf]
        %v526 = vld [vmem:[%s330 + $0x38] sm:$0xf]
        %v527 = vld [vmem:[%s330 + $0x3c] sm:$0xf]
        %v544 = vunpack.c.l.b16 %v512
        %v545 = vunpack.c.l.b16 %v513
        %v546 = vunpack.c.l.b16 %v514
        %v547 = vunpack.c.l.b16 %v515
        %v548 = vunpack.c.l.b16 %v516
        %v549 = vunpack.c.l.b16 %v517
        %v550 = vunpack.c.l.b16 %v518
        %v551 = vunpack.c.l.b16 %v519
        %v552 = vunpack.c.l.b16 %v520
        %v553 = vunpack.c.l.b16 %v521
        %v554 = vunpack.c.l.b16 %v522
        %v555 = vunpack.c.l.b16 %v523
        %v556 = vunpack.c.l.b16 %v524
        %v557 = vunpack.c.l.b16 %v525
        %v558 = vunpack.c.l.b16 %v526
        %v559 = vunpack.c.l.b16 %v527
        %v560 = vpack.c.b16 %v545, %v544
        %v561 = vpack.c.b16 %v547, %v546
        %v562 = vpack.c.b16 %v549, %v548
        %v563 = vpack.c.b16 %v551, %v550
        %v564 = vpack.c.b16 %v553, %v552
        %v565 = vpack.c.b16 %v555, %v554
        %v566 = vpack.c.b16 %v557, %v556
        %v567 = vpack.c.b16 %v559, %v558
        %576 = vmatpush.bf16.msra.mxu0 %v567
        %577 = vmatpush.bf16.msra.mxu0 %v566
        %578 = vmatpush.bf16.msra.mxu0 %v565
        %579 = vmatpush.bf16.msra.mxu0 %v564
        %580 = vmatpush.bf16.msra.mxu0 %v563
        %581 = vmatpush.bf16.msra.mxu0 %v562
        %582 = vmatpush.bf16.msra.mxu0 %v561
        %583 = vmatpush.bf16.msra.mxu0 %v560
        %584 = vmatmul.bf16.gmra.mxu0 %v511
        %v585 = vpop.f32.mrf.mxu0
        %v586 = vadd.f32 0.0, %v585
        %v587 = vpop.f32.mrf.mxu0
        %v588 = vadd.f32 0.0, %v587
        %589 = vdwg.mxu0
        %v590 = vadd.f32 %v509, %v586
        %v591 = vadd.f32 %v510, %v588
        %592 = vst [vmem:[#allocation2] sm:$0xff] %v590
        %593 = vst [vmem:[#allocation2 + $0x8] sm:$0xff] %v591
        %p594 = scmp.eq.s32.totalorder %s33, 1
        // Predicated region
        $region61: #{tpu_custom_call.1} parent=39 // pred_check
          %p595 = pneg %p594
        $region62: #{tpu_custom_call.1} parent=39 // pred_check_branch
          %597 = sbr.rel (%p595) target = $region64
        $region63: #{tpu_custom_call.1} parent=39 // pred_region
          %v598 = vld [vmem:[#allocation2] sm:$0xff]
          %v599 = vld [vmem:[#allocation2 + $0x8] sm:$0xff]
          %v600 = vld [vmem:[%s4] sm:$0x1]
          %v602 = vperm.slane %v600, 0
          %v604 = vadd.f32 %v598, %v602
          %v605 = vadd.f32 %v599, %v602
          %606 = vst [vmem:[%s371] sm:$0xff] %v604
          %607 = vst [vmem:[%s371 + $0x8] sm:$0xff] %v605
        $region64: #{tpu_custom_call.1} parent=39 // pred_fallthru
          _
        %s608 = sand.u32 %s173, 1
        %s609 = scalar_lea.sflag [#allocation5], %s608
        %s610 = sand.u32 %s173, 1
        %s611 = smul.addr %s610, 16
        %s612 = scalar_lea.vmem [#allocation11], %s611
        // Predicated region
        $region65: #{tpu_custom_call.1} parent=39 // pred_check
          %p613 = pneg %p183
        $region66: #{tpu_custom_call.1} parent=39 // pred_check_branch
          %615 = sbr.rel (%p613) target = $region68
        $region67: #{tpu_custom_call.1} parent=39 // pred_region
          %s616 = smul.u32 2, %s32
          %618 = vsyncadd %s609, 0
          %s619 = smul.addr %s616, 8
          %s620 = scalar_lea.hbm %s5, %s619
          %s621 = sshll.u32 %s612, 4
          %s622 = int_to_ptr.vmem [resolvable:$true] %s621
          %s623 = sshll.u32 %s620, 4
          %s624 = int_to_ptr.hbm [resolvable:$true] %s623
          %629 = dma.vmem_to_hbm [thread:$0]  %s622, 256, %s624, %s609, 128, 128, 8
        $region68: #{tpu_custom_call.1} parent=39 // pred_fallthru
          _
      $region40: #{tpu_custom_call.1} parent=5 // pred_fallthru
        _
      %p630 = scmp.le.s32.totalorder 2, %s23
      // Predicated region
      $region69: #{tpu_custom_call.1} parent=5 // pred_check
        %p631 = pneg %p630
      $region70: #{tpu_custom_call.1} parent=5 // pred_check_branch
        %633 = sbr.rel (%p631) target = $region72
      $region71: #{tpu_custom_call.1} parent=5 // pred_region
        %s634 = ssub.s32 %s23, 2
        // Predicated region
        $region73: #{tpu_custom_call.1} parent=71 // pred_check
          %p635 = pneg %p189
        $region74: #{tpu_custom_call.1} parent=71 // pred_check_branch
          %637 = sbr.rel (%p635) target = $region76
        $region75: #{tpu_custom_call.1} parent=71 // pred_region
          %s638 = sand.u32 %s174, 1
          %s639 = scalar_lea.sflag [#allocation5], %s638
          %s640 = sand.u32 %s174, 1
          %s641 = smul.addr %s640, 16
          %s642 = scalar_lea.vmem [#allocation11], %s641
          %644 = dma.done %s639, 256
        $region76: #{tpu_custom_call.1} parent=71 // pred_fallthru
          _
      $region72: #{tpu_custom_call.1} parent=5 // pred_fallthru
        _
    $region6: #{tpu_custom_call.1} parent=1 // loop_footer
      %s27 = sadd.s32 1, %s23
    $region7: #{tpu_custom_call.1} parent=1 // loop_footer_branch
      %22 = sbr.rel target = $region3
    $region8: #{tpu_custom_call.1} parent=1 // loop_exit
      _
    %645 = vsyncpa [#allocation4], 1
    %s646 = scalar_lea.sflag [#allocation4], 1
    %647 = vsyncpa %s646, 1
    %648 = vsyncpa [#allocation7], 1
    %s649 = scalar_lea.sflag [#allocation7], 1
    %650 = vsyncpa %s649, 1
    %651 = vsyncpa [#allocation10], 1
    %s652 = scalar_lea.sflag [#allocation10], 1
    %653 = vsyncpa %s652, 1
    %654 = vsyncpa [#allocation5], 1
    %s655 = scalar_lea.sflag [#allocation5], 1
    %656 = vsyncpa %s655, 1

</llo_original>
